<compile_context>
chip_gen: v7x
topology: tpu7x:2x2x1
jax: 0.10.0
libtpu: 0.0.40
codegen_flags: <defaults>
</compile_context>

<pallas_src>
import jax
import jax.numpy as jnp
from jax.experimental import pallas as pl
from jax.experimental.pallas import tpu as pltpu


def _round_up(x: int, m: int) -> int:
    return (x + m - 1) // m * m


def _decoder_kernel(z_ref, w_ref, b_ref, o_ref):
    # One (tm, K) x (K, tn) MXU matmul with f32 accumulation, f32 bias add,
    # Identity activation, cast to the output dtype.
    acc = jnp.dot(z_ref[...], w_ref[...], preferred_element_type=jnp.float32)
    o_ref[...] = (acc + b_ref[...].astype(jnp.float32)).astype(o_ref.dtype)


def _pick_tm(B: int, cap: int = 1024) -> int:
    """Batch tile: big (amortize ~0.35us/step) but >= 2 blocks when B > 8."""
    if B <= 8:
        return B  # single block equal to the full batch dim
    tm = min(cap, _round_up(pl.cdiv(B, 2), 8), _round_up(B, 8))
    return max(tm, 8)


def decoder_forward(z, w_t, b, *, tm=None, tn=None, compute_dtype=jnp.bfloat16):
    """y = z @ w_t + b  (nn.Linear(latent_dim, output_dim) + Identity).

    z:   (B, latent_dim)
    w_t: (latent_dim, output_dim)   (transposed PyTorch weight)
    b:   (output_dim,) or (1, output_dim)
    Returns (B, output_dim) in z's original dtype.
    """
    B, K = z.shape
    Kw, N = w_t.shape
    assert K == Kw, "latent_dim mismatch between z and w_t"
    out_dtype = z.dtype

    if b.ndim == 1:
        b = b.reshape(1, N)
    assert b.shape == (1, N), f"bias must be (1, {N}) or ({N},), got {b.shape}"
    b = b.astype(jnp.float32)  # bias add stays in f32

    # Reduced-precision inputs (f32 accumulation in-kernel); None => as-is.
    if compute_dtype is not None:
        z = z.astype(compute_dtype)
        w_t = w_t.astype(compute_dtype)

    # Batch tile selection (8-aligned partial tiles, or one full-batch block).
    if tm is None:
        tm = _pick_tm(B)
    if tm >= B:
        tm = B
    else:
        tm = _round_up(max(tm, 8), 8)

    itemsize = jnp.dtype(z.dtype).itemsize
    cost = pl.CostEstimate(
        flops=2 * B * K * N,
        transcendentals=0,
        bytes_accessed=(z.size * itemsize + w_t.size * itemsize
                        + b.size * 4 + B * N * jnp.dtype(out_dtype).itemsize),
    )

    # Working set if weight/bias are fully resident (output double-buffered).
    resident_bytes = (K * N * itemsize
                      + 2 * tm * N * jnp.dtype(out_dtype).itemsize
                      + 2 * tm * K * itemsize)
    hold_resident = (tn is None) and (resident_bytes <= 8 * 1024 * 1024)

    if hold_resident:
        # 1-D grid over batch; weight/bias stay in VMEM for the whole call.
        grid = (pl.cdiv(B, tm),)
        in_specs = [
            pl.BlockSpec((tm, K), lambda i: (i, 0)),   # activations
            pl.BlockSpec((K, N), lambda i: (0, 0)),    # weight, resident
            pl.BlockSpec((1, N), lambda i: (0, 0)),    # bias, resident
        ]
        out_specs = pl.BlockSpec((tm, N), lambda i: (i, 0))
        dims = ("parallel",)
    else:
        # Very wide output_dim: also tile N with 128-aligned tiles (partial
        # last block is masked by Pallas -- still no wrapper padding).
        if tn is None:
            tn = 512
        tn = min(_round_up(tn, 128), _round_up(N, 128))
        grid = (pl.cdiv(B, tm), pl.cdiv(N, tn))
        in_specs = [
            pl.BlockSpec((tm, K), lambda i, j: (i, 0)),
            pl.BlockSpec((K, tn), lambda i, j: (0, j)),
            pl.BlockSpec((1, tn), lambda i, j: (0, j)),
        ]
        out_specs = pl.BlockSpec((tm, tn), lambda i, j: (i, j))
        dims = ("parallel", "parallel")

    return pl.pallas_call(
        _decoder_kernel,
        out_shape=jax.ShapeDtypeStruct((B, N), out_dtype),
        grid_spec=pl.GridSpec(grid=grid, in_specs=in_specs, out_specs=out_specs),
        compiler_params=pltpu.CompilerParams(dimension_semantics=dims),
        cost_estimate=cost,
    )(z, w_t, b)


if __name__ == "__main__":
    key = jax.random.PRNGKey(0)
    kz, kw, kb, kz2 = jax.random.split(key, 4)

    # --- Small shapes matching the module's forward (Linear(32 -> 64)) ---
    batch, latent_dim, output_dim = 8, 32, 64

    # Deterministic parameter init (shapes per nn.Linear(latent_dim, output_dim)).
    # PyTorch stores weight as (output_dim, latent_dim); kernel uses the
    # transposed copy for a row-major matmul.
    bound = 1.0 / (latent_dim ** 0.5)
    w = jax.random.uniform(kw, (output_dim, latent_dim), jnp.float32, -bound, bound)
    b = jax.random.uniform(kb, (1, output_dim), jnp.float32, -bound, bound)
    w_t = jnp.transpose(w)  # (latent_dim, output_dim)

    z = jax.random.normal(kz, (batch, latent_dim), jnp.float32)
    ref = z @ w.T + b  # Identity activation

    # Exact-f32 path (matches PyTorch numerics).
    out = jax.block_until_ready(decoder_forward(z, w_t, b, compute_dtype=None))
    assert out.shape == (batch, output_dim)
    assert jnp.allclose(out, ref, atol=1e-5, rtol=1e-5)

    # Default path: bf16 inputs, f32 accumulation -> looser tolerance.
    out_bf16 = jax.block_until_ready(decoder_forward(z, w_t, b))
    assert out_bf16.shape == (batch, output_dim)
    assert jnp.allclose(out_bf16, ref, atol=5e-2, rtol=5e-2)

    # --- Larger, non-tile-multiple batch: >=2 batch blocks (both v7x TCs) and
    #     a masked partial last block with no wrapper pad/slice. ---
    z_big = jax.random.normal(kz2, (500, latent_dim), jnp.float32)
    out_big = jax.block_until_ready(decoder_forward(z_big, w_t, b, compute_dtype=None))
    ref_big = z_big @ w.T + b
    assert out_big.shape == (500, output_dim)
    assert jnp.allclose(out_big, ref_big, atol=1e-5, rtol=1e-5)

    print("KERNEL_OK")
</pallas_src>

<mosaic_0001>
module attributes {stable_mosaic.version = 11 : i64} {
  func.func @_decoder_kernel(%arg0: i32, %arg1: memref<8x32xf32, #tpu.memory_space<vmem>>, %arg2: memref<32x64xf32, #tpu.memory_space<vmem>>, %arg3: memref<1x64xf32, #tpu.memory_space<vmem>>, %arg4: memref<8x64xf32, #tpu.memory_space<vmem>>) attributes {dimension_semantics = [#tpu.dimension_semantics<parallel>], iteration_bounds = array<i64: 1>, scalar_prefetch = 0 : i64, scratch_operands = 0 : i64, tpu.core_type = #tpu.core_type<tc>, window_params = [{transform_indices = @transform_0, window_bounds = array<i64: 8, 32>}, {pipeline_mode = #tpu.pipeline_mode<synchronous>, transform_indices = @transform_1, window_bounds = array<i64: 32, 64>}, {pipeline_mode = #tpu.pipeline_mode<synchronous>, transform_indices = @transform_2, window_bounds = array<i64: 1, 64>}, {transform_indices = @transform_3, window_bounds = array<i64: 8, 64>}]} {
    %c0 = arith.constant 0 : index
    %c0_0 = arith.constant 0 : index
    %0 = vector.load %arg1[%c0, %c0_0] : memref<8x32xf32, #tpu.memory_space<vmem>>, vector<8x32xf32>
    %c0_1 = arith.constant 0 : index
    %c0_2 = arith.constant 0 : index
    %1 = vector.load %arg2[%c0_1, %c0_2] : memref<32x64xf32, #tpu.memory_space<vmem>>, vector<32x64xf32>
    %cst = arith.constant dense<0.000000e+00> : vector<8x64xf32>
    %2 = tpu.matmul %0, %1, %cst {dimension_numbers = #tpu.dot_dimension_numbers<[1], [0], [0], [1], [0, 0, 1, 1], [], []>} : vector<8x32xf32>, vector<32x64xf32>, vector<8x64xf32> -> vector<8x64xf32>
    %c0_3 = arith.constant 0 : index
    %c0_4 = arith.constant 0 : index
    %3 = vector.load %arg3[%c0_3, %c0_4] : memref<1x64xf32, #tpu.memory_space<vmem>>, vector<1x64xf32>
    %4 = vector.broadcast %3 : vector<1x64xf32> to vector<8x64xf32>
    %5 = arith.addf %2, %4 : vector<8x64xf32>
    %c0_5 = arith.constant 0 : index
    %c0_6 = arith.constant 0 : index
    %6 = vector.load %arg4[%c0_5, %c0_6] : memref<8x64xf32, #tpu.memory_space<vmem>>, vector<8x64xf32>
    tpu.vector_store %arg4[%c0_5, %c0_6], %5 {strides = array<i32>} : memref<8x64xf32, #tpu.memory_space<vmem>>, vector<8x64xf32>,
    return
  }
  func.func @transform_0(%arg0: i32) -> (i32, i32) {
    %c0_i32 = arith.constant 0 : i32
    %c0_i32_0 = arith.constant 0 : i32
    return %arg0, %c0_i32 : i32, i32
  }
  func.func @transform_1(%arg0: i32) -> (i32, i32) {
    %c0_i32 = arith.constant 0 : i32
    %c0_i32_0 = arith.constant 0 : i32
    %c0_i32_1 = arith.constant 0 : i32
    return %c0_i32, %c0_i32_0 : i32, i32
  }
  func.func @transform_2(%arg0: i32) -> (i32, i32) {
    %c0_i32 = arith.constant 0 : i32
    %c0_i32_0 = arith.constant 0 : i32
    %c0_i32_1 = arith.constant 0 : i32
    return %c0_i32, %c0_i32_0 : i32, i32
  }
  func.func @transform_3(%arg0: i32) -> (i32, i32) {
    %c0_i32 = arith.constant 0 : i32
    %c0_i32_0 = arith.constant 0 : i32
    return %arg0, %c0_i32 : i32, i32
  }
}

</mosaic_0001>

<llo_original>
// kernel: tpu_custom_call.1
$region0: #{tpu_custom_call.1}
  #allocation0 [shape = 'u32[]', space=smem, size = 0x4, offset = 0x4, fixed_abs, tag = 'smem constant byte address 0x4 - core index']
  #allocation1 [shape = 'u32[144,128]{1,0:T(1,128)}', space=vmem, size = 0x12000, scoped, tag = 'internal scratch']
  %s0 = inlined_call_operand.hbm [shape: f32[8,32], index: 0, kind: input, shape index: {}]
  %s1 = inlined_call_operand.hbm [shape: f32[32,64], index: 1, kind: input, shape index: {}]
  %s2 = inlined_call_operand.vmem [shape: f32[1,64], index: 2, kind: input, shape index: {}]
  %s3 = inlined_call_operand.hbm [shape: f32[8,64], index: 3, kind: output, shape index: {}]
  %s4 = sld [smem:[#allocation0]]
  $region30: #{tpu_custom_call.1} parent=0
    _
  %s6 = ssub.s32 1, %s4
  %s7 = scalar_select 0, %s6, %s4
  $region1: #{tpu_custom_call.1} parent=0
    #allocation2 [shape = 'u8[4096]{0}', space=vmem, size = 0x1000, scoped, tag = 'input window, operand 0, single buffered']
    #allocation3 [shape = 's32[1]{0}', space=sflag, size = 0x4, scoped, tag = 'scoped memory for tpu_custom_call.1']
    #allocation4 [shape = 's32[1]{0}', space=sflag, size = 0x4, scoped, tag = 'scoped memory for tpu_custom_call.1']
    #allocation5 [shape = 'u8[16384]{0}', space=vmem, size = 0x4000, scoped, tag = 'input window, operand 1, single buffered']
    #allocation6 [shape = 's32[1]{0}', space=sflag, size = 0x4, scoped, tag = 'scoped memory for tpu_custom_call.1']
    #allocation7 [shape = 'u8[4096]{0}', space=vmem, size = 0x1000, scoped, tag = 'output window, operand 0, single buffered']
    %8 = vsyncpa [#allocation3], 0
    %9 = vsyncpa [#allocation6], 0
    %10 = vsyncpa [#allocation4], 0
    // Predicated region
    $region2: #{tpu_custom_call.1} parent=1 // pred_check
      _
    $region3: #{tpu_custom_call.1} parent=1 // pred_check_branch
      %12 = sbr.rel (0) target = $region5
    $region4: #{tpu_custom_call.1} parent=1 // pred_region
      %s14 = ssub.s32 128, 128
      %15 = vsyncadd [#allocation3], %s14
      %s17 = sshll.u32 [#allocation2], 4
      %s18 = int_to_ptr.vmem [resolvable:$true] %s17
      %20 = dma.hbm_to_vmem [thread:$0]  %s0, 128, %s18, [#allocation3]
    $region5: #{tpu_custom_call.1} parent=1 // pred_fallthru
      _
    // Predicated region
    $region6: #{tpu_custom_call.1} parent=1 // pred_check
      _
    $region7: #{tpu_custom_call.1} parent=1 // pred_check_branch
      %22 = sbr.rel (0) target = $region9
    $region8: #{tpu_custom_call.1} parent=1 // pred_region
      %s24 = ssub.s32 512, 512
      %25 = vsyncadd [#allocation6], %s24
      %s26 = sshll.u32 [#allocation5], 4
      %s27 = int_to_ptr.vmem [resolvable:$true] %s26
      %32 = dma.hbm_to_vmem [thread:$0]  %s1, 512, %s27, [#allocation6], 128, 128, 8
    $region9: #{tpu_custom_call.1} parent=1 // pred_fallthru
      _
    // Predicated region
    $region10: #{tpu_custom_call.1} parent=1 // pred_check
      _
    $region11: #{tpu_custom_call.1} parent=1 // pred_check_branch
      %34 = sbr.rel (0) target = $region13
    $region12: #{tpu_custom_call.1} parent=1 // pred_region
      _
    $region13: #{tpu_custom_call.1} parent=1 // pred_fallthru
      _
    // Predicated region
    $region14: #{tpu_custom_call.1} parent=1 // pred_check
      _
    $region15: #{tpu_custom_call.1} parent=1 // pred_check_branch
      %36 = sbr.rel (0) target = $region17
    $region16: #{tpu_custom_call.1} parent=1 // pred_region
      %37 = dma.done [#allocation3], 128
    $region17: #{tpu_custom_call.1} parent=1 // pred_fallthru
      _
    // Predicated region
    $region18: #{tpu_custom_call.1} parent=1 // pred_check
      _
    $region19: #{tpu_custom_call.1} parent=1 // pred_check_branch
      %39 = sbr.rel (0) target = $region21
    $region20: #{tpu_custom_call.1} parent=1 // pred_region
      %40 = dma.done [#allocation6], 512
    $region21: #{tpu_custom_call.1} parent=1 // pred_fallthru
      _
    %v41 = vld [vmem:[#allocation2] sm:$0xff]
    %v42 = vld [vmem:[#allocation5] sm:$0xff]
    %v43 = vld [vmem:[#allocation5 + $0x8] sm:$0xff]
    %v44 = vld [vmem:[#allocation5 + $0x10] sm:$0xff]
    %v45 = vld [vmem:[#allocation5 + $0x18] sm:$0xff]
    %v46 = vld [vmem:[%s2] sm:$0x1]
    %v48 = vlaneseq
    %v49 = vshrl.u32 %v48, 7
    %v50 = vsub.s32 0, %v49
    %v51 = vrot.slane %v46, %v50
    %vm53 = vcmask 261120
    %v55 = vsel %vm53, %v41, 0
    %57 = vmatprep.subr.mxu0 0.0
    %58 = vmatpush1.msra.mxu0 %v42
    %59 = vmatprep.subr.mxu0 0.0
    %60 = vmatpush1.msra.mxu0 %v43
    %61 = vmatprep.subr.mxu0 0.0
    %62 = vmatpush1.msra.mxu0 %v44
    %63 = vmatprep.subr.mxu0 0.0
    %64 = vmatpush1.msra.mxu0 %v45
    %65 = vmatprep.subr.mxu0 0.0
    %66 = vmatpush1.msra.mxu0 0.0
    %67 = vmatprep.subr.mxu0 0.0
    %68 = vmatpush1.msra.mxu0 0.0
    %69 = vmatprep.subr.mxu0 0.0
    %70 = vmatpush1.msra.mxu0 0.0
    %71 = vmatprep.subr.mxu0 0.0
    %72 = vmatpush1.msra.mxu0 0.0
    %73 = vmatprep.subr.mxu0 0.0
    %74 = vmatpush1.msra.mxu0 0.0
    %75 = vmatprep.subr.mxu0 0.0
    %76 = vmatpush1.msra.mxu0 0.0
    %77 = vmatprep.subr.mxu0 0.0
    %78 = vmatpush1.msra.mxu0 0.0
    %79 = vmatprep.subr.mxu0 0.0
    %80 = vmatpush1.msra.mxu0 0.0
    %81 = vmatprep.subr.mxu0 0.0
    %82 = vmatpush1.msra.mxu0 0.0
    %83 = vmatprep.subr.mxu0 0.0
    %84 = vmatpush1.msra.mxu0 0.0
    %85 = vmatprep.subr.mxu0 0.0
    %86 = vmatpush1.msra.mxu0 0.0
    %87 = vmatprep.subr.mxu0 0.0
    %88 = vmatpush1.msra.mxu0 0.0
    %89 = vmatprep.subr.mxu0 0.0
    %90 = vmatpush1.msra.mxu0 0.0
    %91 = vmatprep.subr.mxu0 0.0
    %92 = vmatpush1.msra.mxu0 0.0
    %93 = vmatprep.subr.mxu0 0.0
    %94 = vmatpush1.msra.mxu0 0.0
    %95 = vmatprep.subr.mxu0 0.0
    %96 = vmatpush1.msra.mxu0 0.0
    %97 = vmatprep.subr.mxu0 0.0
    %98 = vmatpush1.msra.mxu0 0.0
    %99 = vmatprep.subr.mxu0 0.0
    %100 = vmatpush1.msra.mxu0 0.0
    %101 = vmatprep.subr.mxu0 0.0
    %102 = vmatpush1.msra.mxu0 0.0
    %103 = vmatprep.subr.mxu0 0.0
    %104 = vmatpush1.msra.mxu0 0.0
    %105 = vmatprep.subr.mxu0 0.0
    %106 = vmatpush1.msra.mxu0 0.0
    %107 = vmatprep.subr.mxu0 0.0
    %108 = vmatpush1.msra.mxu0 0.0
    %109 = vmatprep.subr.mxu0 0.0
    %110 = vmatpush1.msra.mxu0 0.0
    %111 = vmatprep.subr.mxu0 0.0
    %112 = vmatpush1.msra.mxu0 0.0
    %113 = vmatprep.subr.mxu0 0.0
    %114 = vmatpush1.msra.mxu0 0.0
    %115 = vmatprep.subr.mxu0 0.0
    %116 = vmatpush1.msra.mxu0 0.0
    %117 = vmatprep.subr.mxu0 0.0
    %118 = vmatpush1.msra.mxu0 0.0
    %119 = vmatprep.subr.mxu0 0.0
    %120 = vmatpush1.msra.mxu0 0.0
    %121 = vmatprep.mubr.f32.mxu0 0.0
    %122 = vmatmul.mubr.f32.gmra.mrb[0].mxu0 %v55
    %v123 = vpop.f32.mrb[0].mxu0
    %v124 = vadd.f32 %v51, %v123
    %v125 = vpop.f32.mrb[0].mxu0
    %126 = vdwg.mxu0
    %vm127 = vcmask 523264
    %128 = vst.msk [vmem:[#allocation7] sm:$0xff] %vm127, %v124
    // Predicated region
    $region22: #{tpu_custom_call.1} parent=1 // pred_check
      _
    $region23: #{tpu_custom_call.1} parent=1 // pred_check_branch
      %130 = sbr.rel (0) target = $region25
    $region24: #{tpu_custom_call.1} parent=1 // pred_region
      %s132 = ssub.s32 128, 128
      %133 = vsyncadd [#allocation4], %s132
      %s135 = sshll.u32 [#allocation7], 4
      %s136 = int_to_ptr.vmem [resolvable:$true] %s135
      %138 = dma.vmem_to_hbm [thread:$0]  %s136, 128, %s3, [#allocation4]
    $region25: #{tpu_custom_call.1} parent=1 // pred_fallthru
      _
    // Predicated region
    $region26: #{tpu_custom_call.1} parent=1 // pred_check
      _
    $region27: #{tpu_custom_call.1} parent=1 // pred_check_branch
      %140 = sbr.rel (0) target = $region29
    $region28: #{tpu_custom_call.1} parent=1 // pred_region
      %141 = dma.done [#allocation4], 128
    $region29: #{tpu_custom_call.1} parent=1 // pred_fallthru
      _
    %142 = vsyncpa [#allocation3], 1
    %143 = vsyncpa [#allocation6], 1
    %144 = vsyncpa [#allocation4], 1

</llo_original>
